<compile_context>
chip_gen: v7x
topology: tpu7x:2x2x1
jax: 0.10.0
libtpu: 0.0.40
codegen_flags: <defaults>
</compile_context>

<pallas_src>
import functools

import jax
import jax.numpy as jnp
import numpy as np
from jax import lax
from jax.experimental import pallas as pl
from jax.experimental.pallas import tpu as pltpu


def _cdiv(a, b):
    return (a + b - 1) // b


def _sublane_multiple(*dtypes):
    """Sublane multiple needed so every input's packed tile is full."""
    m = 8
    for dt in dtypes:
        item = jnp.dtype(dt).itemsize
        m = max(m, 32 // max(item, 1))  # f32: 8, bf16: 16, int8/bool: 32
    return m


def _vmem_config():
    """(input_budget_bytes, vmem_limit_bytes, max_feature_tile) per generation."""
    try:
        cap = int(pltpu.get_tpu_info().vmem_capacity_bytes)
    except Exception:  # conservative fallback (treat as 64 MiB part)
        cap = 64 << 20
    if cap >= (100 << 20):          # v5e / v6e: 128 MiB VMEM
        return 48 << 20, 96 << 20, 4096
    return 24 << 20, 40 << 20, 2048  # v7x: 64 MiB per TensorCore


def _choose_tiles(n, f, bytes_per_elem, sublane_mult, *,
                  max_feature_tile, vmem_budget_bytes, min_f_tiles=2):
    """Padding-aware (tn, tf) choice + grid extents.

    Budget models the double-buffered input blocks: 2 * tn * tf * bytes/elem.
    """
    # ---- feature tile (lanes) ----
    f_units = _cdiv(max(f, 1), 128)
    max_tf_units = max(1, max_feature_tile // 128)
    want_tiles = _cdiv(f_units, max_tf_units)
    if f_units >= min_f_tiles:
        want_tiles = max(want_tiles, min_f_tiles)   # >= 2 tiles -> megacore on v7x
    want_tiles = min(want_tiles, f_units)
    tf_units = _cdiv(f_units, want_tiles)
    tf = tf_units * 128
    n_f_tiles = _cdiv(f_units, tf_units)

    # ---- batch tile (sublanes) ----
    max_tn_rows = vmem_budget_bytes // (2 * tf * bytes_per_elem)
    max_tn_units = max(1, max_tn_rows // sublane_mult)
    n_units = _cdiv(max(n, 1), sublane_mult)
    n_b_tiles = _cdiv(n_units, max_tn_units)
    tn_units = _cdiv(n_units, n_b_tiles)
    tn = tn_units * sublane_mult
    n_b_tiles = _cdiv(n_units, tn_units)
    return tn, tf, n_f_tiles, n_b_tiles


def _masked_mae_kernel(yhat_ref, y_ref, mask_ref, out_ref, num_ref, den_ref,
                       *, n, f, tn, tf):
    j = pl.program_id(0)   # feature tile (parallel)
    b = pl.program_id(1)   # batch tile  (arbitrary, reduction axis — last)

    @pl.when(b == 0)
    def _():
        num_ref[...] = jnp.zeros_like(num_ref)
        den_ref[...] = jnp.zeros_like(den_ref)

    m = mask_ref[...].astype(jnp.float32)                              # (tn, tf)
    diff = jnp.abs(yhat_ref[...] - y_ref[...]).astype(jnp.float32)     # (tn, tf)

    # Ragged edge tiles: OOB block contents are undefined (possibly NaN), so
    # gate with jnp.where on an explicit validity mask (never multiply-by-0).
    valid = None
    if n % tn != 0:
        rows = lax.broadcasted_iota(jnp.int32, (tn, tf), 0) + b * tn
        valid = rows < n
    if f % tf != 0:
        cols = lax.broadcasted_iota(jnp.int32, (tn, tf), 1) + j * tf
        cvalid = cols < f
        valid = cvalid if valid is None else (valid & cvalid)
    if valid is not None:
        m = jnp.where(valid, m, 0.0)
        diff = jnp.where(valid, diff, 0.0)

    prod = m * diff

    # Accumulate (8, tf) partial sums with plain VPU adds (no per-step
    # cross-sublane reduce).  tn is always a multiple of 8.
    num_acc = num_ref[...]
    den_acc = den_ref[...]
    for i in range(tn // 8):
        sl = slice(i * 8, (i + 1) * 8)
        num_acc = num_acc + prod[sl, :]
        den_acc = den_acc + m[sl, :]
    num_ref[...] = num_acc
    den_ref[...] = den_acc

    @pl.when(b == pl.num_programs(1) - 1)
    def _():
        num = jnp.sum(num_ref[...], axis=0, keepdims=True)   # (1, tf)
        den = jnp.sum(den_ref[...], axis=0, keepdims=True)   # (1, tf)
        # .clip(min=1) on the per-feature mask count, then masked MAE.
        out_ref[...] = num / jnp.maximum(den, 1.0)


def masked_mae_loss(y_hat, y, mask, *,
                    max_feature_tile=None,
                    vmem_budget_bytes=None):
    """Pallas implementation of MaskedMAELoss.forward. Inputs: (N, F) arrays.

    Mask may be any dtype (bool / int8 recommended — fewer HBM bytes); it is
    upcast to f32 inside the kernel, preserving the PyTorch weighting math.
    """
    y_hat = jnp.asarray(y_hat)
    y = jnp.asarray(y)
    mask = jnp.asarray(mask)
    n, f = y_hat.shape
    assert y.shape == (n, f) and mask.shape == (n, f)

    budget, vmem_limit, default_max_tf = _vmem_config()
    if vmem_budget_bytes is None:
        vmem_budget_bytes = budget
    if max_feature_tile is None:
        max_feature_tile = default_max_tf

    bytes_per_elem = (jnp.dtype(y_hat.dtype).itemsize
                      + jnp.dtype(y.dtype).itemsize
                      + jnp.dtype(mask.dtype).itemsize)
    sublane_mult = _sublane_multiple(y_hat.dtype, y.dtype, mask.dtype)

    tn, tf, n_f_tiles, n_b_tiles = _choose_tiles(
        n, f, bytes_per_elem, sublane_mult,
        max_feature_tile=max_feature_tile,
        vmem_budget_bytes=vmem_budget_bytes)

    kernel = functools.partial(_masked_mae_kernel, n=n, f=f, tn=tn, tf=tf)
    in_spec = pl.BlockSpec((tn, tf), lambda j, b: (b, j))

    per_feature = pl.pallas_call(
        kernel,
        out_shape=jax.ShapeDtypeStruct((1, f), jnp.float32),
        grid_spec=pltpu.PrefetchScalarGridSpec(
            num_scalar_prefetch=0,
            grid=(n_f_tiles, n_b_tiles),   # (feature [parallel], batch [arbitrary])
            in_specs=[in_spec, in_spec, in_spec],
            out_specs=pl.BlockSpec((1, tf), lambda j, b: (0, j)),
            scratch_shapes=[pltpu.VMEM((8, tf), jnp.float32),   # numerator partials
                            pltpu.VMEM((8, tf), jnp.float32)],  # mask-count partials
        ),
        compiler_params=pltpu.CompilerParams(
            dimension_semantics=("parallel", "arbitrary"),
            vmem_limit_bytes=vmem_limit,
        ),
        cost_estimate=pl.CostEstimate(
            flops=6 * n * f,
            transcendentals=0,
            bytes_accessed=n * f * bytes_per_elem + 4 * f,
        ),
    )(y_hat, y, mask)

    # Final mean over (true) features — tiny F-length reduce in the wrapper.
    return jnp.sum(per_feature) / jnp.float32(f)


def _reference(y_hat, y, mask):
    y_hat = jnp.asarray(y_hat, jnp.float32)
    y = jnp.asarray(y, jnp.float32)
    mask = jnp.asarray(mask, jnp.float32)
    den = jnp.maximum(jnp.sum(mask, axis=0), 1.0)   # .clip(min=1)
    w = mask / den
    return jnp.mean(jnp.sum(w * jnp.abs(y_hat - y), axis=0))


if __name__ == "__main__":
    key = jax.random.PRNGKey(0)
    k1, k2, k3 = jax.random.split(key, 3)

    # Small, deliberately unaligned shapes (exercise the ragged in-kernel path):
    # 12 samples, 300 features; mask streamed as int8 (narrow dtype).
    N, F = 12, 300
    y_hat = jax.random.normal(k1, (N, F), dtype=jnp.float32)
    y = jax.random.normal(k2, (N, F), dtype=jnp.float32)
    mask = (jax.random.uniform(k3, (N, F)) > 0.3).astype(jnp.int8)

    loss = masked_mae_loss(y_hat, y, mask)
    jax.block_until_ready(loss)

    ref = _reference(y_hat, y, mask)
    assert np.allclose(np.asarray(loss), np.asarray(ref), rtol=1e-5, atol=1e-6), (
        loss,
        ref,
    )
    print("KERNEL_OK")
</pallas_src>

<mosaic_0001>
module attributes {stable_mosaic.version = 11 : i64} {
  func.func @_masked_mae_kernel(%arg0: i32, %arg1: i32, %arg2: memref<32x256xf32, #tpu.memory_space<vmem>>, %arg3: memref<32x256xf32, #tpu.memory_space<vmem>>, %arg4: memref<32x256xi8, #tpu.memory_space<vmem>>, %arg5: memref<1x256xf32, #tpu.memory_space<vmem>>, %arg6: memref<8x256xf32, #tpu.memory_space<vmem>>, %arg7: memref<8x256xf32, #tpu.memory_space<vmem>>) attributes {dimension_semantics = [#tpu.dimension_semantics<parallel>, #tpu.dimension_semantics<arbitrary>], iteration_bounds = array<i64: 2, 1>, scalar_prefetch = 0 : i64, scratch_operands = 2 : i64, tpu.core_type = #tpu.core_type<tc>, window_params = [{transform_indices = @transform_0, window_bounds = array<i64: 32, 256>}, {transform_indices = @transform_1, window_bounds = array<i64: 32, 256>}, {transform_indices = @transform_2, window_bounds = array<i64: 32, 256>}, {transform_indices = @transform_3, window_bounds = array<i64: 1, 256>}]} {
    %c0_i32 = arith.constant 0 : i32
    %0 = arith.cmpi eq, %arg1, %c0_i32 : i32
    %1 = arith.extui %0 : i1 to i32
    %c0_i32_0 = arith.constant 0 : i32
    %2 = arith.cmpi ne, %1, %c0_i32_0 : i32
    scf.if %2 {
      %cst_17 = arith.constant 0.000000e+00 : f32
      %50 = vector.broadcast %cst_17 : f32 to vector<8x256xf32>
      %c0_18 = arith.constant 0 : index
      %c0_19 = arith.constant 0 : index
      %51 = vector.load %arg6[%c0_18, %c0_19] : memref<8x256xf32, #tpu.memory_space<vmem>>, vector<8x256xf32>
      tpu.vector_store %arg6[%c0_18, %c0_19], %50 {strides = array<i32>} : memref<8x256xf32, #tpu.memory_space<vmem>>, vector<8x256xf32>,
      %cst_20 = arith.constant 0.000000e+00 : f32
      %52 = vector.broadcast %cst_20 : f32 to vector<8x256xf32>
      %c0_21 = arith.constant 0 : index
      %c0_22 = arith.constant 0 : index
      %53 = vector.load %arg7[%c0_21, %c0_22] : memref<8x256xf32, #tpu.memory_space<vmem>>, vector<8x256xf32>
      tpu.vector_store %arg7[%c0_21, %c0_22], %52 {strides = array<i32>} : memref<8x256xf32, #tpu.memory_space<vmem>>, vector<8x256xf32>,
    } else {
    }
    %c0 = arith.constant 0 : index
    %c0_1 = arith.constant 0 : index
    %3 = vector.load %arg4[%c0, %c0_1] : memref<32x256xi8, #tpu.memory_space<vmem>>, vector<32x256xi8>
    %4 = arith.sitofp %3 : vector<32x256xi8> to vector<32x256xf32>
    %c0_2 = arith.constant 0 : index
    %c0_3 = arith.constant 0 : index
    %5 = vector.load %arg2[%c0_2, %c0_3] : memref<32x256xf32, #tpu.memory_space<vmem>>, vector<32x256xf32>
    %c0_4 = arith.constant 0 : index
    %c0_5 = arith.constant 0 : index
    %6 = vector.load %arg3[%c0_4, %c0_5] : memref<32x256xf32, #tpu.memory_space<vmem>>, vector<32x256xf32>
    %7 = arith.subf %5, %6 : vector<32x256xf32>
    %8 = math.absf %7 : vector<32x256xf32>
    %9 = tpu.iota {dimensions = array<i32: 0>} : vector<32x256xi32>
    %c32_i32 = arith.constant 32 : i32
    %10 = arith.muli %arg1, %c32_i32 : i32
    %11 = vector.broadcast %10 : i32 to vector<32x256xi32>
    %12 = arith.addi %9, %11 : vector<32x256xi32>
    %c12_i32 = arith.constant 12 : i32
    %13 = vector.broadcast %c12_i32 : i32 to vector<32x256xi32>
    %14 = arith.cmpi slt, %12, %13 : vector<32x256xi32>
    %15 = tpu.iota {dimensions = array<i32: 1>} : vector<32x256xi32>
    %c256_i32 = arith.constant 256 : i32
    %16 = arith.muli %arg0, %c256_i32 : i32
    %17 = vector.broadcast %16 : i32 to vector<32x256xi32>
    %18 = arith.addi %15, %17 : vector<32x256xi32>
    %c300_i32 = arith.constant 300 : i32
    %19 = vector.broadcast %c300_i32 : i32 to vector<32x256xi32>
    %20 = arith.cmpi slt, %18, %19 : vector<32x256xi32>
    %21 = arith.andi %14, %20 : vector<32x256xi1>
    %cst = arith.constant 0.000000e+00 : f32
    %22 = vector.broadcast %cst : f32 to vector<32x256xf32>
    %23 = arith.select %21, %4, %22 : vector<32x256xi1>, vector<32x256xf32>
    %cst_6 = arith.constant 0.000000e+00 : f32
    %24 = vector.broadcast %cst_6 : f32 to vector<32x256xf32>
    %25 = arith.select %21, %8, %24 : vector<32x256xi1>, vector<32x256xf32>
    %26 = arith.mulf %23, %25 : vector<32x256xf32>
    %c0_7 = arith.constant 0 : index
    %c0_8 = arith.constant 0 : index
    %27 = vector.load %arg6[%c0_7, %c0_8] : memref<8x256xf32, #tpu.memory_space<vmem>>, vector<8x256xf32>
    %c0_9 = arith.constant 0 : index
    %c0_10 = arith.constant 0 : index
    %28 = vector.load %arg7[%c0_9, %c0_10] : memref<8x256xf32, #tpu.memory_space<vmem>>, vector<8x256xf32>
    %29 = vector.extract_strided_slice %26 {offsets = [0, 0], sizes = [8, 256], strides = [1, 1]} : vector<32x256xf32> to vector<8x256xf32>
    %30 = arith.addf %27, %29 : vector<8x256xf32>
    %31 = vector.extract_strided_slice %23 {offsets = [0, 0], sizes = [8, 256], strides = [1, 1]} : vector<32x256xf32> to vector<8x256xf32>
    %32 = arith.addf %28, %31 : vector<8x256xf32>
    %33 = vector.extract_strided_slice %26 {offsets = [8, 0], sizes = [8, 256], strides = [1, 1]} : vector<32x256xf32> to vector<8x256xf32>
    %34 = arith.addf %30, %33 : vector<8x256xf32>
    %35 = vector.extract_strided_slice %23 {offsets = [8, 0], sizes = [8, 256], strides = [1, 1]} : vector<32x256xf32> to vector<8x256xf32>
    %36 = arith.addf %32, %35 : vector<8x256xf32>
    %37 = vector.extract_strided_slice %26 {offsets = [16, 0], sizes = [8, 256], strides = [1, 1]} : vector<32x256xf32> to vector<8x256xf32>
    %38 = arith.addf %34, %37 : vector<8x256xf32>
    %39 = vector.extract_strided_slice %23 {offsets = [16, 0], sizes = [8, 256], strides = [1, 1]} : vector<32x256xf32> to vector<8x256xf32>
    %40 = arith.addf %36, %39 : vector<8x256xf32>
    %41 = vector.extract_strided_slice %26 {offsets = [24, 0], sizes = [8, 256], strides = [1, 1]} : vector<32x256xf32> to vector<8x256xf32>
    %42 = arith.addf %38, %41 : vector<8x256xf32>
    %43 = vector.extract_strided_slice %23 {offsets = [24, 0], sizes = [8, 256], strides = [1, 1]} : vector<32x256xf32> to vector<8x256xf32>
    %44 = arith.addf %40, %43 : vector<8x256xf32>
    %c0_11 = arith.constant 0 : index
    %c0_12 = arith.constant 0 : index
    %45 = vector.load %arg6[%c0_11, %c0_12] : memref<8x256xf32, #tpu.memory_space<vmem>>, vector<8x256xf32>
    tpu.vector_store %arg6[%c0_11, %c0_12], %42 {strides = array<i32>} : memref<8x256xf32, #tpu.memory_space<vmem>>, vector<8x256xf32>,
    %c0_13 = arith.constant 0 : index
    %c0_14 = arith.constant 0 : index
    %46 = vector.load %arg7[%c0_13, %c0_14] : memref<8x256xf32, #tpu.memory_space<vmem>>, vector<8x256xf32>
    tpu.vector_store %arg7[%c0_13, %c0_14], %44 {strides = array<i32>} : memref<8x256xf32, #tpu.memory_space<vmem>>, vector<8x256xf32>,
    %c0_i32_15 = arith.constant 0 : i32
    %47 = arith.cmpi eq, %arg1, %c0_i32_15 : i32
    %48 = arith.extui %47 : i1 to i32
    %c0_i32_16 = arith.constant 0 : i32
    %49 = arith.cmpi ne, %48, %c0_i32_16 : i32
    scf.if %49 {
      %c0_17 = arith.constant 0 : index
      %c0_18 = arith.constant 0 : index
      %50 = vector.load %arg6[%c0_17, %c0_18] : memref<8x256xf32, #tpu.memory_space<vmem>>, vector<8x256xf32>
      %cst_19 = arith.constant dense<0.000000e+00> : vector<256xf32>
      %51 = vector.multi_reduction <add>, %50, %cst_19 [0] : vector<8x256xf32> to vector<256xf32>
      %52 = vector.shape_cast %51 : vector<256xf32> to vector<1x256xf32>
      %c0_20 = arith.constant 0 : index
      %c0_21 = arith.constant 0 : index
      %53 = vector.load %arg7[%c0_20, %c0_21] : memref<8x256xf32, #tpu.memory_space<vmem>>, vector<8x256xf32>
      %cst_22 = arith.constant dense<0.000000e+00> : vector<256xf32>
      %54 = vector.multi_reduction <add>, %53, %cst_22 [0] : vector<8x256xf32> to vector<256xf32>
      %55 = vector.shape_cast %54 : vector<256xf32> to vector<1x256xf32>
      %cst_23 = arith.constant 1.000000e+00 : f32
      %56 = vector.broadcast %cst_23 : f32 to vector<1x256xf32>
      %57 = arith.maximumf %55, %56 : vector<1x256xf32>
      %58 = arith.divf %52, %57 : vector<1x256xf32>
      %c0_24 = arith.constant 0 : index
      %c0_25 = arith.constant 0 : index
      %59 = vector.load %arg5[%c0_24, %c0_25] : memref<1x256xf32, #tpu.memory_space<vmem>>, vector<1x256xf32>
      tpu.vector_store %arg5[%c0_24, %c0_25], %58 {strides = array<i32>} : memref<1x256xf32, #tpu.memory_space<vmem>>, vector<1x256xf32>,
    } else {
    }
    return
  }
  func.func @transform_0(%arg0: i32, %arg1: i32) -> (i32, i32) {
    %c0_i32 = arith.constant 0 : i32
    return %arg1, %arg0 : i32, i32
  }
  func.func @transform_1(%arg0: i32, %arg1: i32) -> (i32, i32) {
    %c0_i32 = arith.constant 0 : i32
    return %arg1, %arg0 : i32, i32
  }
  func.func @transform_2(%arg0: i32, %arg1: i32) -> (i32, i32) {
    %c0_i32 = arith.constant 0 : i32
    return %arg1, %arg0 : i32, i32
  }
  func.func @transform_3(%arg0: i32, %arg1: i32) -> (i32, i32) {
    %c0_i32 = arith.constant 0 : i32
    %c0_i32_0 = arith.constant 0 : i32
    return %c0_i32, %arg0 : i32, i32
  }
}

</mosaic_0001>

<llo_original>
// kernel: tpu_custom_call.1
$region0: #{tpu_custom_call.1}
  #allocation0 [shape = 'u32[]', space=smem, size = 0x4, offset = 0x4, fixed_abs, tag = 'smem constant byte address 0x4 - core index']
  #allocation1 [shape = 'u32[144,128]{1,0:T(1,128)}', space=vmem, size = 0x12000, scoped, tag = 'internal scratch']
  #allocation2 [shape = 'f32[8,256]{1,0:T(8,128)}', space=vmem, size = 0x2000, scoped, tag = 'scratch operand']
  #allocation3 [shape = 'f32[8,256]{1,0:T(8,128)}', space=vmem, size = 0x2000, scoped, tag = 'scratch operand']
  %s0 = inlined_call_operand.hbm [shape: f32[12,300], index: 0, kind: input, shape index: {}]
  %s1 = inlined_call_operand.hbm [shape: f32[12,300], index: 1, kind: input, shape index: {}]
  %s2 = inlined_call_operand.hbm [shape: s8[12,300], index: 2, kind: input, shape index: {}]
  %s3 = inlined_call_operand.hbm [shape: f32[1,300], index: 3, kind: output, shape index: {}]
  %s4 = sld [smem:[#allocation0]]
  $region65: #{tpu_custom_call.1} parent=0
    _
  %s6 = ssub.s32 1, %s4
  %s7 = scalar_select 0, %s6, %s4
  $region1: #{tpu_custom_call.1} parent=0
    #allocation4 [shape = 'u8[65536]{0}', space=vmem, size = 0x10000, scoped, tag = 'input window, operand 0']
    #allocation5 [shape = 's32[2]{0}', space=sflag, size = 0x8, scoped, tag = 'scoped memory for tpu_custom_call.1']
    #allocation6 [shape = 's32[2]{0}', space=sflag, size = 0x8, scoped, tag = 'scoped memory for tpu_custom_call.1']
    #allocation7 [shape = 'u8[65536]{0}', space=vmem, size = 0x10000, scoped, tag = 'input window, operand 1']
    #allocation8 [shape = 's32[2]{0}', space=sflag, size = 0x8, scoped, tag = 'scoped memory for tpu_custom_call.1']
    #allocation9 [shape = 'u8[16384]{0}', space=vmem, size = 0x4000, scoped, tag = 'input window, operand 2']
    #allocation10 [shape = 'u8[2048]{0}', space=vmem, size = 0x800, scoped, tag = 'output window, operand 0']
    %8 = vsyncpa [#allocation5], 0
    %s9 = scalar_lea.sflag [#allocation5], 1
    %10 = vsyncpa %s9, 0
    %11 = vsyncpa [#allocation8], 0
    %s12 = scalar_lea.sflag [#allocation8], 1
    %13 = vsyncpa %s12, 0
    %14 = vsyncpa [#allocation6], 0
    %s15 = scalar_lea.sflag [#allocation6], 1
    %16 = vsyncpa %s15, 0
    loop: start=0, step=1, limit=4
    $region2: #{tpu_custom_call.1} parent=1 // loop_pre_header
      _
    $region3: #{tpu_custom_call.1} parent=1 // loop_header
      %s18 = sphi 0, %s22
      %p19 = scmp.ge.s32.totalorder %s18, 4
      %s25 = sphi 0, %s37
      %s26 = sphi 0, %s33
      %s27 = sphi 0, %s25
      %s28 = sphi 0, %s26
      %s29 = sphi 0, %s27
      %s30 = sphi 0, %s28
      %s42 = sphi 0, %s44
      %s45 = sphi 0, %s42
      %s46 = sphi 0, %s45
      %s62 = sphi 0, %s46
      %s70 = sphi 0, %s72
      %s73 = sphi 0, %s70
      %s74 = sphi 0, %s73
      %s90 = sphi 0, %s74
      %s98 = sphi 0, %s100
      %s101 = sphi 0, %s98
      %s102 = sphi 0, %s101
      %s118 = sphi 0, %s102
      %s124 = sphi 0, %s126
      %s127 = sphi 0, %s124
      %s128 = sphi 0, %s127
      %s144 = sphi 0, %s128
    $region4: #{tpu_custom_call.1} parent=1 // loop_header_branch
      %21 = sbr.rel (%p19) target = $region8
    $region5: #{tpu_custom_call.1} parent=1 // loop_body
      %s23 = ssub.s32 %s18, 1
      %s24 = ssub.s32 %s18, 2
      %s31 = sadd.s32 1, %s26
      %p32 = scmp.ge.s32.totalorder %s31, 1
      %s33 = scalar_select %p32, 0, %s31
      %s34 = sadd.s32 1, %s25
      %s35 = scalar_select %p32, %s34, %s25
      %p36 = scmp.ge.s32.totalorder %s35, 2
      %s37 = scalar_select %p36, 0, %s35
      %s38 = ssub.s32 %s26, %s33
      %s39 = ssub.s32 %s25, %s37
      %s40 = sor.u32 %s38, %s39
      %p41 = scmp.eq.s32.totalorder %s40, 0
      %s43 = sadd.s32 %s42, 1
      %s44 = scalar_select %p41, %s42, %s43
      %p47 = pneg %p41
      %p48 = scmp.eq.s32.totalorder %s18, 1
      %p49 = por %p47, %p48
      %p50 = scmp.ne.s32.totalorder %s42, %s45
      %p51 = scmp.eq.s32.totalorder %s18, 0
      %p52 = por %p50, %p51
      %p53 = scmp.ne.s32.totalorder %s42, %s45
      %p54 = scmp.eq.s32.totalorder %s23, 1
      %p55 = por %p53, %p54
      %p56 = scmp.ne.s32.totalorder %s45, %s46
      %p57 = scmp.eq.s32.totalorder %s23, 0
      %p58 = por %p56, %p57
      %p59 = scmp.ne.s32.totalorder %s45, %s46
      %p60 = scmp.eq.s32.totalorder %s24, 1
      %p61 = por %p59, %p60
      %p63 = scmp.ne.s32.totalorder %s46, %s62
      %p64 = scmp.eq.s32.totalorder %s24, 0
      %p65 = por %p63, %p64
      %s66 = ssub.s32 %s26, %s33
      %s67 = ssub.s32 %s25, %s37
      %s68 = sor.u32 %s66, %s67
      %p69 = scmp.eq.s32.totalorder %s68, 0
      %s71 = sadd.s32 %s70, 1
      %s72 = scalar_select %p69, %s70, %s71
      %p75 = pneg %p69
      %p76 = scmp.eq.s32.totalorder %s18, 1
      %p77 = por %p75, %p76
      %p78 = scmp.ne.s32.totalorder %s70, %s73
      %p79 = scmp.eq.s32.totalorder %s18, 0
      %p80 = por %p78, %p79
      %p81 = scmp.ne.s32.totalorder %s70, %s73
      %p82 = scmp.eq.s32.totalorder %s23, 1
      %p83 = por %p81, %p82
      %p84 = scmp.ne.s32.totalorder %s73, %s74
      %p85 = scmp.eq.s32.totalorder %s23, 0
      %p86 = por %p84, %p85
      %p87 = scmp.ne.s32.totalorder %s73, %s74
      %p88 = scmp.eq.s32.totalorder %s24, 1
      %p89 = por %p87, %p88
      %p91 = scmp.ne.s32.totalorder %s74, %s90
      %p92 = scmp.eq.s32.totalorder %s24, 0
      %p93 = por %p91, %p92
      %s94 = ssub.s32 %s26, %s33
      %s95 = ssub.s32 %s25, %s37
      %s96 = sor.u32 %s94, %s95
      %p97 = scmp.eq.s32.totalorder %s96, 0
      %s99 = sadd.s32 %s98, 1
      %s100 = scalar_select %p97, %s98, %s99
      %p103 = pneg %p97
      %p104 = scmp.eq.s32.totalorder %s18, 1
      %p105 = por %p103, %p104
      %p106 = scmp.ne.s32.totalorder %s98, %s101
      %p107 = scmp.eq.s32.totalorder %s18, 0
      %p108 = por %p106, %p107
      %p109 = scmp.ne.s32.totalorder %s98, %s101
      %p110 = scmp.eq.s32.totalorder %s23, 1
      %p111 = por %p109, %p110
      %p112 = scmp.ne.s32.totalorder %s101, %s102
      %p113 = scmp.eq.s32.totalorder %s23, 0
      %p114 = por %p112, %p113
      %p115 = scmp.ne.s32.totalorder %s101, %s102
      %p116 = scmp.eq.s32.totalorder %s24, 1
      %p117 = por %p115, %p116
      %p119 = scmp.ne.s32.totalorder %s102, %s118
      %p120 = scmp.eq.s32.totalorder %s24, 0
      %p121 = por %p119, %p120
      %s122 = ssub.s32 %s25, %s37
      %p123 = scmp.eq.s32.totalorder %s122, 0
      %s125 = sadd.s32 %s124, 1
      %s126 = scalar_select %p123, %s124, %s125
      %p129 = pneg %p123
      %p130 = scmp.eq.s32.totalorder %s18, 1
      %p131 = por %p129, %p130
      %p132 = scmp.ne.s32.totalorder %s124, %s127
      %p133 = scmp.eq.s32.totalorder %s18, 0
      %p134 = por %p132, %p133
      %p135 = scmp.ne.s32.totalorder %s124, %s127
      %p136 = scmp.eq.s32.totalorder %s23, 1
      %p137 = por %p135, %p136
      %p138 = scmp.ne.s32.totalorder %s127, %s128
      %p139 = scmp.eq.s32.totalorder %s23, 0
      %p140 = por %p138, %p139
      %p141 = scmp.ne.s32.totalorder %s127, %s128
      %p142 = scmp.eq.s32.totalorder %s24, 1
      %p143 = por %p141, %p142
      %p145 = scmp.ne.s32.totalorder %s128, %s144
      %p146 = scmp.eq.s32.totalorder %s24, 0
      %p147 = por %p145, %p146
      %p148 = scmp.le.s32.totalorder 1, %s18
      %p149 = scmp.lt.s32.totalorder %s18, 3
      %p150 = pnand %p148, %p149
      %p151 = pneg %p150
      // Predicated region
      $region9: #{tpu_custom_call.1} parent=5 // pred_check
        _
      $region10: #{tpu_custom_call.1} parent=5 // pred_check_branch
        %153 = sbr.rel (%p150) target = $region12
      $region11: #{tpu_custom_call.1} parent=5 // pred_region
        %s154 = ssub.s32 %s18, 1
      $region12: #{tpu_custom_call.1} parent=5 // pred_fallthru
        _
      %p155 = scmp.lt.s32.totalorder %s18, 2
      // Predicated region
      $region13: #{tpu_custom_call.1} parent=5 // pred_check
        %p156 = pneg %p155
      $region14: #{tpu_custom_call.1} parent=5 // pred_check_branch
        %158 = sbr.rel (%p156) target = $region16
      $region15: #{tpu_custom_call.1} parent=5 // pred_region
        // Predicated region
        $region17: #{tpu_custom_call.1} parent=15 // pred_check
          %p159 = pneg %p52
        $region18: #{tpu_custom_call.1} parent=15 // pred_check_branch
          %161 = sbr.rel (%p159) target = $region20
        $region19: #{tpu_custom_call.1} parent=15 // pred_region
          %s162 = sand.u32 %s42, 1
          %s163 = scalar_lea.sflag [#allocation5], %s162
          %s164 = sand.u32 %s42, 1
          %s165 = smul.addr %s164, 64
          %s166 = scalar_lea.vmem [#allocation4], %s165
          %s167 = smul.u32 4, %s26
          %s168 = smul.u32 2, %s25
          %s169 = ssub.s32 2, %s167
          %s170 = smul.u32 128, %s169
          %s171 = ssub.s32 3, %s168
          %p172 = scmp.lt.s32.totalorder %s171, 2
          %s173 = scalar_select %p172, %s171, 2
          %s174 = smul.u32 %s170, %s173
          %s176 = ssub.s32 1024, %s174
          %177 = vsyncadd %s163, %s176
          %p178 = scmp.ne.s32.totalorder 0, %s174
          %s179 = smul.addr %s167, 3
          %s180 = sadd.s32 %s168, %s179
          %s181 = smul.addr %s180, 128
          %s182 = scalar_lea.hbm %s0, %s181
          %s183 = smul.u32 %s173, 8
          %s184 = smul.u32 %s183, %s169
          %s185 = sshll.u32 %s166, 4
          %s186 = int_to_ptr.vmem [resolvable:$true] %s185
          %s187 = sshll.u32 %s184, 4
          %191 = dma.hbm_to_vmem [thread:$0]  (%p178), %s182, %s187, %s186, %s163, 384, 256, %s183
        $region20: #{tpu_custom_call.1} parent=15 // pred_fallthru
          _
        // Predicated region
        $region21: #{tpu_custom_call.1} parent=15 // pred_check
          %p192 = pneg %p80
        $region22: #{tpu_custom_call.1} parent=15 // pred_check_branch
          %194 = sbr.rel (%p192) target = $region24
        $region23: #{tpu_custom_call.1} parent=15 // pred_region
          %s195 = sand.u32 %s18, 1
          %s196 = scalar_lea.sflag [#allocation8], %s195
          %s197 = sand.u32 %s70, 1
          %s198 = smul.addr %s197, 64
          %s199 = scalar_lea.vmem [#allocation7], %s198
          %s200 = smul.u32 4, %s26
          %s201 = smul.u32 2, %s25
          %s202 = ssub.s32 2, %s200
          %s203 = smul.u32 128, %s202
          %s204 = ssub.s32 3, %s201
          %p205 = scmp.lt.s32.totalorder %s204, 2
          %s206 = scalar_select %p205, %s204, 2
          %s207 = smul.u32 %s203, %s206
          %s209 = ssub.s32 1024, %s207
          %210 = vsyncadd %s196, %s209
          %p211 = scmp.ne.s32.totalorder 0, %s207
          %s212 = smul.addr %s200, 3
          %s213 = sadd.s32 %s201, %s212
          %s214 = smul.addr %s213, 128
          %s215 = scalar_lea.hbm %s1, %s214
          %s216 = smul.u32 %s206, 8
          %s217 = smul.u32 %s216, %s202
          %s218 = sshll.u32 %s199, 4
          %s219 = int_to_ptr.vmem [resolvable:$true] %s218
          %s220 = sshll.u32 %s217, 4
          %224 = dma.hbm_to_vmem [thread:$0]  (%p211), %s215, %s220, %s219, %s196, 384, 256, %s216
        $region24: #{tpu_custom_call.1} parent=15 // pred_fallthru
          _
        // Predicated region
        $region25: #{tpu_custom_call.1} parent=15 // pred_check
          %p225 = pneg %p108
        $region26: #{tpu_custom_call.1} parent=15 // pred_check_branch
          %227 = sbr.rel (%p225) target = $region28
        $region27: #{tpu_custom_call.1} parent=15 // pred_region
          %s228 = sand.u32 %s18, 1
          %s229 = scalar_lea.sflag [#allocation8], %s228
          %s230 = sand.u32 %s98, 1
          %s231 = smul.addr %s230, 16
          %s232 = scalar_lea.vmem [#allocation9], %s231
          %s233 = smul.u32 4, %s26
          %s234 = smul.u32 2, %s25
          %s235 = ssub.s32 2, %s233
          %s236 = smul.u32 32, %s235
          %s237 = ssub.s32 3, %s234
          %p238 = scmp.lt.s32.totalorder %s237, 2
          %s239 = scalar_select %p238, %s237, 2
          %s240 = smul.u32 %s236, %s239
          %s242 = ssub.s32 256, %s240
          %243 = vsyncadd %s229, %s242
          %p244 = scmp.ne.s32.totalorder 0, %s240
          %s245 = smul.addr %s233, 3
          %s246 = sadd.s32 %s234, %s245
          %s247 = smul.addr %s246, 32
          %s248 = scalar_lea.hbm %s2, %s247
          %s249 = smul.u32 %s239, 2
          %s250 = smul.u32 %s249, %s235
          %s251 = sshll.u32 %s232, 4
          %s252 = int_to_ptr.vmem [resolvable:$true] %s251
          %s253 = sshll.u32 %s250, 4
          %257 = dma.hbm_to_vmem [thread:$0]  (%p244), %s248, %s253, %s252, %s229, 96, 64, %s249
        $region28: #{tpu_custom_call.1} parent=15 // pred_fallthru
          _
      $region16: #{tpu_custom_call.1} parent=5 // pred_fallthru
        _
      %p258 = scmp.le.s32.totalorder 1, %s18
      %p259 = scmp.lt.s32.totalorder %s18, 3
      %p260 = pnand %p258, %p259
      %p261 = pneg %p260
      // Predicated region
      $region29: #{tpu_custom_call.1} parent=5 // pred_check
        _
      $region30: #{tpu_custom_call.1} parent=5 // pred_check_branch
        %263 = sbr.rel (%p260) target = $region32
      $region31: #{tpu_custom_call.1} parent=5 // pred_region
        %s264 = ssub.s32 %s18, 1
        %s265 = sand.u32 %s45, 1
        %s266 = scalar_lea.sflag [#allocation5], %s265
        %s267 = sand.u32 %s45, 1
        %s268 = smul.addr %s267, 64
        %s269 = scalar_lea.vmem [#allocation4], %s268
        // Predicated region
        $region33: #{tpu_custom_call.1} parent=31 // pred_check
          %p270 = pneg %p58
        $region34: #{tpu_custom_call.1} parent=31 // pred_check_branch
          %272 = sbr.rel (%p270) target = $region36
        $region35: #{tpu_custom_call.1} parent=31 // pred_region
          %273 = dma.done %s266, 1024
        $region36: #{tpu_custom_call.1} parent=31 // pred_fallthru
          _
        %s274 = sand.u32 %s23, 1
        %s275 = scalar_lea.sflag [#allocation8], %s274
        %s276 = sand.u32 %s73, 1
        %s277 = smul.addr %s276, 64
        %s278 = scalar_lea.vmem [#allocation7], %s277
        // Predicated region
        $region37: #{tpu_custom_call.1} parent=31 // pred_check
          %p279 = pneg %p86
        $region38: #{tpu_custom_call.1} parent=31 // pred_check_branch
          %281 = sbr.rel (%p279) target = $region40
        $region39: #{tpu_custom_call.1} parent=31 // pred_region
          %282 = dma.done %s275, 1024
        $region40: #{tpu_custom_call.1} parent=31 // pred_fallthru
          _
        %s283 = sand.u32 %s23, 1
        %s284 = scalar_lea.sflag [#allocation8], %s283
        %s285 = sand.u32 %s101, 1
        %s286 = smul.addr %s285, 16
        %s287 = scalar_lea.vmem [#allocation9], %s286
        // Predicated region
        $region41: #{tpu_custom_call.1} parent=31 // pred_check
          %p288 = pneg %p114
        $region42: #{tpu_custom_call.1} parent=31 // pred_check_branch
          %290 = sbr.rel (%p288) target = $region44
        $region43: #{tpu_custom_call.1} parent=31 // pred_region
          %291 = dma.done %s284, 256
        $region44: #{tpu_custom_call.1} parent=31 // pred_fallthru
          _
        %s292 = sand.u32 %s45, 1
        %s293 = scalar_lea.sflag [#allocation5], %s292
        %s294 = sand.u32 %s45, 1
        %s295 = smul.addr %s294, 64
        %s296 = scalar_lea.vmem [#allocation4], %s295
        %p297 = pneg %p58
        %p298 = pneg %p55
        %s299 = sand.u32 %s23, 1
        %s300 = scalar_lea.sflag [#allocation8], %s299
        %s301 = sand.u32 %s73, 1
        %s302 = smul.addr %s301, 64
        %s303 = scalar_lea.vmem [#allocation7], %s302
        %p304 = pneg %p86
        %p305 = pneg %p83
        %s306 = sand.u32 %s23, 1
        %s307 = scalar_lea.sflag [#allocation8], %s306
        %s308 = sand.u32 %s101, 1
        %s309 = smul.addr %s308, 16
        %s310 = scalar_lea.vmem [#allocation9], %s309
        %p311 = pneg %p114
        %p312 = pneg %p111
        %p313 = pneg %p140
        %p314 = pneg %p137
        %s315 = sand.u32 %s127, 1
        %s316 = scalar_lea.sflag [#allocation6], %s315
        %s317 = sand.u32 %s127, 1
        %s318 = smul.addr %s317, 2
        %s319 = scalar_lea.vmem [#allocation10], %s318
        %s320 = smul.u32 4, %s28
        %s321 = smul.u32 2, %s27
        %s322 = ssub.s32 2, %s320
        %s323 = smul.u32 128, %s322
        %s324 = ssub.s32 3, %s321
        %p325 = scmp.lt.s32.totalorder %s324, 2
        %s326 = scalar_select %p325, %s324, 2
        %s327 = smul.u32 %s323, %s326
        %s328 = smul.u32 4, %s28
        %s329 = smul.u32 2, %s27
        %s330 = ssub.s32 2, %s328
        %s331 = smul.u32 128, %s330
        %s332 = ssub.s32 3, %s329
        %p333 = scmp.lt.s32.totalorder %s332, 2
        %s334 = scalar_select %p333, %s332, 2
        %s335 = smul.u32 %s331, %s334
        %s336 = smul.u32 4, %s28
        %s337 = smul.u32 2, %s27
        %s338 = ssub.s32 2, %s336
        %s339 = smul.u32 32, %s338
        %s340 = ssub.s32 3, %s337
        %p341 = scmp.lt.s32.totalorder %s340, 2
        %s342 = scalar_select %p341, %s340, 2
        %s343 = smul.u32 %s339, %s342
        %s344 = smul.u32 2, %s27
        %s345 = ssub.s32 3, %s344
        %p346 = scmp.lt.s32.totalorder %s345, 2
        %s347 = scalar_select %p346, %s345, 2
        %s348 = smul.u32 16, %s347
        %p349 = scmp.eq.s32.totalorder %s28, 0
        // Predicated region
        $region45: #{tpu_custom_call.1} parent=31 // pred_check
          %p350 = pneg %p349
        $region46: #{tpu_custom_call.1} parent=31 // pred_check_branch
          %352 = sbr.rel (%p350) target = $region48
        $region47: #{tpu_custom_call.1} parent=31 // pred_region
          %353 = vst [vmem:[#allocation2] sm:$0xff] 0.0
          %354 = vst [vmem:[#allocation2 + $0x8] sm:$0xff] 0.0
          %355 = vst [vmem:[#allocation3] sm:$0xff] 0.0
          %356 = vst [vmem:[#allocation3 + $0x8] sm:$0xff] 0.0
        $region48: #{tpu_custom_call.1} parent=31 // pred_fallthru
          _
        %v357 = vld [vmem:[%s287] sm:$0xf]
        %v358 = vld [vmem:[%s287 + $0x4] sm:$0xf]
        %v359 = vld [vmem:[%s287 + $0x8] sm:$0xf]
        %v360 = vld [vmem:[%s287 + $0xc] sm:$0xf]
        %v361 = vunpack.c.0.s8 %v357
        %v362 = vunpack.c.1.s8 %v357
        %v363 = vunpack.c.0.s8 %v358
        %v364 = vunpack.c.1.s8 %v358
        %v365 = vunpack.c.0.s8 %v359
        %v366 = vunpack.c.1.s8 %v359
        %v367 = vunpack.c.0.s8 %v360
        %v368 = vunpack.c.1.s8 %v360
        %v369 = vcvt.s32.f32 %v361
        %v370 = vcvt.s32.f32 %v362
        %v371 = vcvt.s32.f32 %v363
        %v372 = vcvt.s32.f32 %v364
        %v373 = vcvt.s32.f32 %v365
        %v374 = vcvt.s32.f32 %v366
        %v375 = vcvt.s32.f32 %v367
        %v376 = vcvt.s32.f32 %v368
        %v377 = vld [vmem:[%s269] sm:$0xff]
        %v378 = vld [vmem:[%s269 + $0x8] sm:$0xff]
        %v379 = vld [vmem:[%s269 + $0x10] sm:$0xff]
        %v380 = vld [vmem:[%s269 + $0x18] sm:$0xff]
        %v381 = vld [vmem:[%s269 + $0x20] sm:$0xff]
        %v382 = vld [vmem:[%s269 + $0x28] sm:$0xff]
        %v383 = vld [vmem:[%s269 + $0x30] sm:$0xff]
        %v384 = vld [vmem:[%s269 + $0x38] sm:$0xff]
        %v385 = vld [vmem:[%s278] sm:$0xff]
        %v386 = vld [vmem:[%s278 + $0x8] sm:$0xff]
        %v387 = vld [vmem:[%s278 + $0x10] sm:$0xff]
        %v388 = vld [vmem:[%s278 + $0x18] sm:$0xff]
        %v389 = vld [vmem:[%s278 + $0x20] sm:$0xff]
        %v390 = vld [vmem:[%s278 + $0x28] sm:$0xff]
        %v391 = vld [vmem:[%s278 + $0x30] sm:$0xff]
        %v392 = vld [vmem:[%s278 + $0x38] sm:$0xff]
        %v393 = vsub.f32 %v377, %v385
        %v394 = vsub.f32 %v378, %v386
        %v395 = vsub.f32 %v379, %v387
        %v396 = vsub.f32 %v380, %v388
        %v397 = vsub.f32 %v381, %v389
        %v398 = vsub.f32 %v382, %v390
        %v399 = vsub.f32 %v383, %v391
        %v400 = vsub.f32 %v384, %v392
        %v401 = vand.u32 2147483647, %v393
        %v402 = vand.u32 2147483647, %v394
        %v403 = vand.u32 2147483647, %v395
        %v404 = vand.u32 2147483647, %v396
        %v405 = vand.u32 2147483647, %v397
        %v406 = vand.u32 2147483647, %v398
        %v407 = vand.u32 2147483647, %v399
        %v408 = vand.u32 2147483647, %v400
        %v409 = vlaneseq
        %v410 = vshrl.u32 %v409, 7
        %v411 = vadd.s32 %v410, 8
        %v412 = vadd.s32 %v410, 16
        %v413 = vadd.s32 %v410, 24
        %s414 = smul.u32 %s28, 32
        %v415 = vstv %s414
        %v416 = vadd.s32 %v410, %v415
        %v417 = vadd.s32 %v411, %v415
        %v418 = vadd.s32 %v412, %v415
        %v419 = vadd.s32 %v413, %v415
        %vm420 = vcmp.lt.s32.totalorder %v416, 12
        %vm421 = vcmp.lt.s32.totalorder %v417, 12
        %vm422 = vcmp.lt.s32.totalorder %v418, 12
        %vm423 = vcmp.lt.s32.totalorder %v419, 12
        %v424 = vlaneseq
        %v425 = vand.u32 %v424, 127
        %v426 = vadd.s32 %v425, 128
        %s427 = smul.u32 %s27, 256
        %v428 = vstv %s427
        %v429 = vadd.s32 %v425, %v428
        %v430 = vadd.s32 %v426, %v428
        %vm431 = vcmp.lt.s32.totalorder %v429, 300
        %vm432 = vcmp.lt.s32.totalorder %v430, 300
        %vm433 = vmand %vm420, %vm431
        %vm434 = vmand %vm420, %vm432
        %vm435 = vmand %vm421, %vm431
        %vm436 = vmand %vm421, %vm432
        %vm437 = vmand %vm422, %vm431
        %vm438 = vmand %vm422, %vm432
        %vm439 = vmand %vm423, %vm431
        %vm440 = vmand %vm423, %vm432
        %v441 = vsel %vm433, %v369, 0.0
        %v442 = vsel %vm434, %v370, 0.0
        %v443 = vsel %vm435, %v371, 0.0
        %v444 = vsel %vm436, %v372, 0.0
        %v445 = vsel %vm437, %v373, 0.0
        %v446 = vsel %vm438, %v374, 0.0
        %v447 = vsel %vm439, %v375, 0.0
        %v448 = vsel %vm440, %v376, 0.0
        %v449 = vsel %vm433, %v401, 0.0
        %v450 = vsel %vm434, %v402, 0.0
        %v451 = vsel %vm435, %v403, 0.0
        %v452 = vsel %vm436, %v404, 0.0
        %v453 = vsel %vm437, %v405, 0.0
        %v454 = vsel %vm438, %v406, 0.0
        %v455 = vsel %vm439, %v407, 0.0
        %v456 = vsel %vm440, %v408, 0.0
        %v457 = vmul.f32 %v441, %v449
        %v458 = vmul.f32 %v442, %v450
        %v459 = vmul.f32 %v443, %v451
        %v460 = vmul.f32 %v444, %v452
        %v461 = vmul.f32 %v445, %v453
        %v462 = vmul.f32 %v446, %v454
        %v463 = vmul.f32 %v447, %v455
        %v464 = vmul.f32 %v448, %v456
        %v465 = vld [vmem:[#allocation2] sm:$0xff]
        %v466 = vld [vmem:[#allocation2 + $0x8] sm:$0xff]
        %v467 = vld [vmem:[#allocation3] sm:$0xff]
        %v468 = vld [vmem:[#allocation3 + $0x8] sm:$0xff]
        %v469 = vadd.f32 %v465, %v457
        %v470 = vadd.f32 %v466, %v458
        %v471 = vadd.f32 %v467, %v441
        %v472 = vadd.f32 %v468, %v442
        %v473 = vadd.f32 %v469, %v459
        %v474 = vadd.f32 %v470, %v460
        %v475 = vadd.f32 %v471, %v443
        %v476 = vadd.f32 %v472, %v444
        %v477 = vadd.f32 %v473, %v461
        %v478 = vadd.f32 %v474, %v462
        %v479 = vadd.f32 %v475, %v445
        %v480 = vadd.f32 %v476, %v446
        %v481 = vadd.f32 %v477, %v463
        %v482 = vadd.f32 %v478, %v464
        %v483 = vadd.f32 %v479, %v447
        %v484 = vadd.f32 %v480, %v448
        %485 = vst [vmem:[#allocation2] sm:$0xff] %v481
        %486 = vst [vmem:[#allocation2 + $0x8] sm:$0xff] %v482
        %487 = vst [vmem:[#allocation3] sm:$0xff] %v483
        %488 = vst [vmem:[#allocation3 + $0x8] sm:$0xff] %v484
        // Predicated region
        $region49: #{tpu_custom_call.1} parent=31 // pred_check
          %p489 = pneg %p349
        $region50: #{tpu_custom_call.1} parent=31 // pred_check_branch
          %491 = sbr.rel (%p489) target = $region52
        $region51: #{tpu_custom_call.1} parent=31 // pred_region
          %v492 = vld [vmem:[#allocation2] sm:$0xff]
          %v493 = vld [vmem:[#allocation2 + $0x8] sm:$0xff]
          %v494 = vrot.slane %v492, 4
          %v495 = vadd.f32 %v492, %v494
          %v496 = vrot.slane %v495, 2
          %v497 = vadd.f32 %v495, %v496
          %v498 = vrot.slane %v497, 1
          %v499 = vadd.f32 %v497, %v498
          %v500 = vrot.slane %v493, 4
          %v501 = vadd.f32 %v493, %v500
          %v502 = vrot.slane %v501, 2
          %v503 = vadd.f32 %v501, %v502
          %v504 = vrot.slane %v503, 1
          %v505 = vadd.f32 %v503, %v504
          %v506 = vld [vmem:[#allocation3] sm:$0xff]
          %v507 = vld [vmem:[#allocation3 + $0x8] sm:$0xff]
          %v508 = vrot.slane %v506, 4
          %v509 = vadd.f32 %v506, %v508
          %v510 = vrot.slane %v509, 2
          %v511 = vadd.f32 %v509, %v510
          %v512 = vrot.slane %v511, 1
          %v513 = vadd.f32 %v511, %v512
          %v514 = vrot.slane %v507, 4
          %v515 = vadd.f32 %v507, %v514
          %v516 = vrot.slane %v515, 2
          %v517 = vadd.f32 %v515, %v516
          %v518 = vrot.slane %v517, 1
          %v519 = vadd.f32 %v517, %v518
          %v520 = vmax.f32 %v513, 1.0
          %v521 = vmax.f32 %v519, 1.0
          %v522 = vrcp.pop %v520
          %v523 = vmul.f32 %v499, %v522
          %v524 = vrcp.pop %v521
          %v525 = vmul.f32 %v505, %v524
          %v528 = vcombine.low %v523, %v525
          %v530 = vunpack.c.l.s4 1966171168
          %v531 = vunpack.c.0.s8 %v530
          %v532 = vlaneseq
          %v533 = vshrl.u32 %v532, 7
          %v534 = vsub.s32 %v531, %v533
          %v535 = vrot.slane %v528, %v534
          %v537 = vunpack.c.l.s4 1966171168
          %v538 = vunpack.c.0.s8 %v537
          %v539 = vlaneseq
          %v540 = vshrl.u32 %v539, 7
          %v541 = vsub.s32 %v538, %v540
          %v542 = vrot.slane %v535, %v541
          %v544 = vlaneseq
          %vm545 = vcmp.ge.s32.totalorder %v544, 0
          %vm546 = vcmp.lt.s32.totalorder %v544, 256
          %vm547 = vmand %vm545, %vm546
          %548 = vst.msk [vmem:[%s319] sm:$0x3] %vm547, %v542
        $region52: #{tpu_custom_call.1} parent=31 // pred_fallthru
          _
        %s549 = sand.u32 %s127, 1
        %s550 = scalar_lea.sflag [#allocation6], %s549
        %s551 = sand.u32 %s127, 1
        %s552 = smul.addr %s551, 2
        %s553 = scalar_lea.vmem [#allocation10], %s552
        // Predicated region
        $region53: #{tpu_custom_call.1} parent=31 // pred_check
          %p554 = pneg %p137
        $region54: #{tpu_custom_call.1} parent=31 // pred_check_branch
          %556 = sbr.rel (%p554) target = $region56
        $region55: #{tpu_custom_call.1} parent=31 // pred_region
          %s557 = smul.u32 2, %s27
          %s558 = ssub.s32 3, %s557
          %p559 = scmp.lt.s32.totalorder %s558, 2
          %s560 = scalar_select %p559, %s558, 2
          %s561 = smul.u32 16, %s560
          %s563 = ssub.s32 32, %s561
          %564 = vsyncadd %s550, %s563
          %p565 = scmp.ne.s32.totalorder 0, %s561
          %s566 = smul.addr %s557, 16
          %s567 = scalar_lea.hbm %s3, %s566
          %s568 = sshll.u32 %s560, 4
          %s569 = sshll.u32 %s553, 4
          %s570 = int_to_ptr.vmem [resolvable:$true] %s569
          %572 = dma.vmem_to_hbm [thread:$0]  (%p565), %s570, %s568, %s567, %s550
        $region56: #{tpu_custom_call.1} parent=31 // pred_fallthru
          _
      $region32: #{tpu_custom_call.1} parent=5 // pred_fallthru
        _
      %p573 = scmp.le.s32.totalorder 2, %s18
      // Predicated region
      $region57: #{tpu_custom_call.1} parent=5 // pred_check
        %p574 = pneg %p573
      $region58: #{tpu_custom_call.1} parent=5 // pred_check_branch
        %576 = sbr.rel (%p574) target = $region60
      $region59: #{tpu_custom_call.1} parent=5 // pred_region
        %s577 = ssub.s32 %s18, 2
        // Predicated region
        $region61: #{tpu_custom_call.1} parent=59 // pred_check
          %p578 = pneg %p143
        $region62: #{tpu_custom_call.1} parent=59 // pred_check_branch
          %580 = sbr.rel (%p578) target = $region64
        $region63: #{tpu_custom_call.1} parent=59 // pred_region
          %s581 = sand.u32 %s128, 1
          %s582 = scalar_lea.sflag [#allocation6], %s581
          %s583 = sand.u32 %s128, 1
          %s584 = smul.addr %s583, 2
          %s585 = scalar_lea.vmem [#allocation10], %s584
          %586 = dma.done %s582, 32
        $region64: #{tpu_custom_call.1} parent=59 // pred_fallthru
          _
      $region60: #{tpu_custom_call.1} parent=5 // pred_fallthru
        _
    $region6: #{tpu_custom_call.1} parent=1 // loop_footer
      %s22 = sadd.s32 1, %s18
    $region7: #{tpu_custom_call.1} parent=1 // loop_footer_branch
      %17 = sbr.rel target = $region3
    $region8: #{tpu_custom_call.1} parent=1 // loop_exit
      _
    %587 = vsyncpa [#allocation5], 1
    %s588 = scalar_lea.sflag [#allocation5], 1
    %589 = vsyncpa %s588, 1
    %590 = vsyncpa [#allocation8], 1
    %s591 = scalar_lea.sflag [#allocation8], 1
    %592 = vsyncpa %s591, 1
    %593 = vsyncpa [#allocation6], 1
    %s594 = scalar_lea.sflag [#allocation6], 1
    %595 = vsyncpa %s594, 1

</llo_original>
